<compile_context>
chip_gen: v6e
topology: v6e:2x2x1
jax: 0.10.0
libtpu: 0.0.40
codegen_flags: <defaults>
</compile_context>

<pallas_src>
import functools
import math

import jax
import jax.numpy as jnp
from jax import lax
from jax.experimental import pallas as pl
from jax.experimental.pallas import tpu as pltpu


# ----------------------------------------------------------------------------
# expand_input (wrapper-side layout plumbing, matches the PyTorch reference)
# ----------------------------------------------------------------------------
def expand_input(states, m):
    """states: [batch, length, n_agents, state_dim]
    returns [batch, length, n_agents, ..., n_agents (m times), m * state_dim]"""
    if m == 0:
        return None
    b, l, n, d = states.shape
    parts = []
    for i in range(m):
        view = (b, l) + tuple(n if j == i else 1 for j in range(m)) + (d,)
        full = (b, l) + (n,) * m + (d,)
        parts.append(jnp.broadcast_to(states.reshape(view), full))
    return jnp.concatenate(parts, axis=-1)


# ----------------------------------------------------------------------------
# Fused MLP + sigmoid kernel (lane-dense activations, bf16 MXU / f32 accumulate)
# ----------------------------------------------------------------------------
def _mlp_kernel(*refs, n_layers, matmul_dtype):
    # refs = (x_ref, w0, b0, w1, b1, ..., w_{L-1}, b_{L-1}, out_ref)
    x_ref = refs[0]
    out_ref = refs[-1]
    params = refs[1:-1]

    x = x_ref[...]                                    # [tile, in_dim] (matmul_dtype)
    w0 = params[0][...]                               # [h0, in_dim]   (matmul_dtype)
    b0 = params[1][...]                               # [h0, 1]        (f32)

    # Layer 0: contract the minor dims of both operands.  This absorbs the layout
    # transpose for free on the MXU: the result is already the lane-dense
    # [d_out, tile] layout (no wrapper .T, no in-kernel transpose, no pad).
    h = lax.dot_general(
        w0, x, (((1,), (1,)), ((), ())),
        preferred_element_type=jnp.float32) + b0       # [h0, tile] f32

    for li in range(1, n_layers):
        h = jnp.maximum(h, 0.0)                        # ReLU on the f32 accumulator
        w = params[2 * li][...]                        # [d_out, d_in] (matmul_dtype)
        b = params[2 * li + 1][...]                    # [d_out, 1]    (f32)
        # The downcast is only an MXU-operand staging cast; bias / ReLU / sigmoid
        # math stays in f32 on the VPU/EUP.
        h = jnp.dot(w, h.astype(matmul_dtype),
                    preferred_element_type=jnp.float32) + b

    # Exact sigmoid (the previous approx reciprocal cost ~2e-3 of accuracy for no
    # measurable speed-up -- this kernel is HBM / overhead bound, not EUP bound).
    y = 1.0 / (1.0 + jnp.exp(-h))
    out_ref[...] = y.astype(out_ref.dtype)             # lane-dense [out_dim, tile] store


def _choose_tile(n_rows, max_tile, *, min_tile=1024, target_steps=8):
    """Lane tile for the multi-block path: a multiple of 128, as large as max_tile,
    shrunk (down to min_tile) until there are >= target_steps grid steps.
    target_steps=8 keeps >= 2-4 steps per TensorCore on v7x (megacore sharding of the
    'parallel' grid axis), so each core still software-pipelines its DMAs."""
    tile = max_tile
    while tile > min_tile and pl.cdiv(n_rows, tile) < target_steps:
        tile //= 2
    return tile


def predicate_nn_forward(states, weights, biases, *, max_tile=8192,
                         matmul_dtype=jnp.bfloat16, out_dtype=jnp.float32):
    """Apply the MLP (+ sigmoid) to the last dim of `states`.

    states : [..., in_dim]  (bf16 recommended: the workload is HBM bound)
    weights: list of [d_out_i, d_in_i]   (torch-native nn.Linear layout)
    biases : list of [d_out_i]
    """
    in_dim = states.shape[-1]
    out_dim = weights[-1].shape[0]
    lead_shape = states.shape[:-1]
    n_rows = math.prod(lead_shape)

    # Natural [N, in_dim] layout straight from HBM: no transpose, no pad, no copy.
    x2d = states.reshape(n_rows, in_dim).astype(matmul_dtype)

    max_tile = max(128, (max_tile // 128) * 128)
    if n_rows <= max_tile:
        tile = n_rows                      # single-block fast path: 1 step, no masking
    else:
        tile = _choose_tile(n_rows, max_tile)
    grid = (pl.cdiv(n_rows, tile),)

    n_layers = len(weights)
    # Weights are tiny and grid-resident; MXU operands in matmul_dtype, biases stay
    # f32 as [d_out, 1] columns (lane-broadcast inside the kernel).
    weights_k = [w.astype(matmul_dtype) for w in weights]
    biases_k = [b.astype(jnp.float32).reshape(-1, 1) for b in biases]

    in_specs = [pl.BlockSpec((tile, in_dim), lambda i: (i, 0))]
    params = []
    for w, b in zip(weights_k, biases_k):
        in_specs.append(pl.BlockSpec(w.shape, lambda i: (0, 0)))
        in_specs.append(pl.BlockSpec(b.shape, lambda i: (0, 0)))
        params.extend([w, b])

    out_specs = pl.BlockSpec((out_dim, tile), lambda i: (0, i))

    kernel = functools.partial(_mlp_kernel, n_layers=n_layers,
                               matmul_dtype=matmul_dtype)

    out_t = pl.pallas_call(
        kernel,
        out_shape=jax.ShapeDtypeStruct((out_dim, n_rows), out_dtype),
        grid=grid,
        in_specs=in_specs,
        out_specs=out_specs,
        compiler_params=pltpu.CompilerParams(
            dimension_semantics=("parallel",),
            # Largest per-step footprint (tile=8192): ~0.3 MiB input + ~0.03 MiB
            # output (double-buffered) + ~2 MiB of f32 intermediates -- far below
            # every generation's VMEM budget (64 MiB on v7x).
            vmem_limit_bytes=32 * 1024 * 1024,
        ),
    )(x2d, *params)

    return out_t.T.reshape(*lead_shape, out_dim)


def n_ary_primitives_forward(states, member, weights, biases, *, max_tile=8192,
                             matmul_dtype=jnp.bfloat16):
    """Full N_aryPrimitivesNN.forward: expand_input -> PredicateNN (MLP + sigmoid).

    The cast to `matmul_dtype` happens *before* expand_input so the n^member amplified
    tensor is written to and read from HBM at half width (the dominant traffic)."""
    if not weights:                         # in_dim == 0 case in the PyTorch module
        return None
    expanded = expand_input(states.astype(matmul_dtype), member)
    if expanded is None:
        return None
    return predicate_nn_forward(expanded, weights, biases, max_tile=max_tile,
                                matmul_dtype=matmul_dtype, out_dtype=states.dtype)


# ----------------------------------------------------------------------------
# Parameter init (torch nn.Linear default, kept in torch-native [d_out, d_in])
# ----------------------------------------------------------------------------
def init_predicate_nn_params(key, in_dim, h_dims, out_dim):
    dims = [in_dim] + list(h_dims) + [out_dim]
    weights, biases = [], []
    for i in range(len(dims) - 1):
        d_in, d_out = dims[i], dims[i + 1]
        key, kw, kb = jax.random.split(key, 3)
        bound = 1.0 / math.sqrt(d_in)
        w = jax.random.uniform(kw, (d_out, d_in), jnp.float32, -bound, bound)
        b = jax.random.uniform(kb, (d_out,), jnp.float32, -bound, bound)
        weights.append(w)
        biases.append(b)
    return weights, biases


# ----------------------------------------------------------------------------
# Plain-JAX reference (same math as the PyTorch module; matmul_dtype controls
# whether operands get the same bf16 rounding as the kernel's MXU path)
# ----------------------------------------------------------------------------
def _reference_forward(states, member, weights, biases, *, matmul_dtype):
    expanded = expand_input(states.astype(matmul_dtype).astype(jnp.float32), member)
    in_dim = expanded.shape[-1]
    x = expanded.reshape(-1, in_dim)
    for i, (w, b) in enumerate(zip(weights, biases)):
        xo = x.astype(matmul_dtype).astype(jnp.float32)
        wo = w.astype(matmul_dtype).astype(jnp.float32)
        x = jnp.dot(xo, wo.T, precision=jax.lax.Precision.HIGHEST) + b
        if i < len(weights) - 1:
            x = jnp.maximum(x, 0.0)
    y = 1.0 / (1.0 + jnp.exp(-x))
    return y.reshape(expanded.shape[:-1] + (weights[-1].shape[0],))


if __name__ == "__main__":
    root_key = jax.random.PRNGKey(0)

    def run_case(case_key, *, member, batch, length, n_agents, state_dim,
                 h_dims, out_dim):
        in_dim = member * state_dim
        k_params, k_x = jax.random.split(case_key)
        weights, biases = init_predicate_nn_params(k_params, in_dim, h_dims, out_dim)
        states = jax.random.normal(
            k_x, (batch, length, n_agents, state_dim), jnp.float32)

        out = n_ary_primitives_forward(states, member, weights, biases)
        out = jax.block_until_ready(out)

        expected_shape = (batch, length) + (n_agents,) * member + (out_dim,)
        assert out.shape == expected_shape, (out.shape, expected_shape)

        # Tight check: reference with the same bf16 MXU-operand rounding
        # (f32 accumulation, f32 bias/ReLU/sigmoid) as the kernel.
        ref_matched = _reference_forward(states, member, weights, biases,
                                         matmul_dtype=jnp.bfloat16)
        err_matched = float(jnp.max(jnp.abs(out - ref_matched)))
        assert err_matched < 1e-3, ("kernel vs bf16-matched reference", err_matched)

        # Loose sanity check against the pure-f32 module reference: the only gap is
        # the documented bf16 rounding of the HBM-resident activations / weights.
        ref_f32 = _reference_forward(states, member, weights, biases,
                                     matmul_dtype=jnp.float32)
        err_f32 = float(jnp.max(jnp.abs(out - ref_f32)))
        assert err_f32 < 5e-2, ("kernel vs f32 reference", err_f32)
        return err_matched, err_f32

    k1, k2 = jax.random.split(root_key)

    # Case 1: the module's demo config (binary predicates) -> 256 rows,
    # single-block fast path (grid=(1,), no masking, minimal overhead).
    run_case(k1, member=2, batch=2, length=8, n_agents=4, state_dim=8,
             h_dims=[32, 32], out_dim=1)

    # Case 2: ternary predicates -> 13824 rows, multi-block tiled path with a
    # partial boundary block (exercises the pl.cdiv grid + masked tail write).
    run_case(k2, member=3, batch=2, length=4, n_agents=12, state_dim=8,
             h_dims=[64, 32], out_dim=1)

    print("KERNEL_OK")
</pallas_src>

<mosaic_0001>
module attributes {stable_mosaic.version = 11 : i64} {
  func.func @_mlp_kernel(%arg0: i32, %arg1: memref<256x16xbf16, #tpu.memory_space<vmem>>, %arg2: memref<32x16xbf16, #tpu.memory_space<vmem>>, %arg3: memref<32x1xf32, #tpu.memory_space<vmem>>, %arg4: memref<32x32xbf16, #tpu.memory_space<vmem>>, %arg5: memref<32x1xf32, #tpu.memory_space<vmem>>, %arg6: memref<1x32xbf16, #tpu.memory_space<vmem>>, %arg7: memref<1x1xf32, #tpu.memory_space<vmem>>, %arg8: memref<1x256xf32, #tpu.memory_space<vmem>>) attributes {dimension_semantics = [#tpu.dimension_semantics<parallel>], iteration_bounds = array<i64: 1>, scalar_prefetch = 0 : i64, scratch_operands = 0 : i64, tpu.core_type = #tpu.core_type<tc>, window_params = [{transform_indices = @transform_0, window_bounds = array<i64: 256, 16>}, {pipeline_mode = #tpu.pipeline_mode<synchronous>, transform_indices = @transform_1, window_bounds = array<i64: 32, 16>}, {pipeline_mode = #tpu.pipeline_mode<synchronous>, transform_indices = @transform_2, window_bounds = array<i64: 32, 1>}, {pipeline_mode = #tpu.pipeline_mode<synchronous>, transform_indices = @transform_3, window_bounds = array<i64: 32, 32>}, {pipeline_mode = #tpu.pipeline_mode<synchronous>, transform_indices = @transform_4, window_bounds = array<i64: 32, 1>}, {pipeline_mode = #tpu.pipeline_mode<synchronous>, transform_indices = @transform_5, window_bounds = array<i64: 1, 32>}, {pipeline_mode = #tpu.pipeline_mode<synchronous>, transform_indices = @transform_6, window_bounds = array<i64: 1, 1>}, {transform_indices = @transform_7, window_bounds = array<i64: 1, 256>}]} {
    %c0 = arith.constant 0 : index
    %c0_0 = arith.constant 0 : index
    %0 = vector.load %arg1[%c0, %c0_0] : memref<256x16xbf16, #tpu.memory_space<vmem>>, vector<256x16xbf16>
    %c0_1 = arith.constant 0 : index
    %c0_2 = arith.constant 0 : index
    %1 = vector.load %arg2[%c0_1, %c0_2] : memref<32x16xbf16, #tpu.memory_space<vmem>>, vector<32x16xbf16>
    %c0_3 = arith.constant 0 : index
    %c0_4 = arith.constant 0 : index
    %2 = vector.load %arg3[%c0_3, %c0_4] : memref<32x1xf32, #tpu.memory_space<vmem>>, vector<32x1xf32>
    %cst = arith.constant dense<0.000000e+00> : vector<32x256xf32>
    %3 = tpu.matmul %1, %0, %cst {dimension_numbers = #tpu.dot_dimension_numbers<[1], [1], [0], [0], [0, 0, 1, 0], [], []>} : vector<32x16xbf16>, vector<256x16xbf16>, vector<32x256xf32> -> vector<32x256xf32>
    %4 = vector.broadcast %2 : vector<32x1xf32> to vector<32x256xf32>
    %5 = arith.addf %3, %4 : vector<32x256xf32>
    %cst_5 = arith.constant 0.000000e+00 : f32
    %6 = vector.broadcast %cst_5 : f32 to vector<32x256xf32>
    %7 = arith.maximumf %5, %6 : vector<32x256xf32>
    %c0_6 = arith.constant 0 : index
    %c0_7 = arith.constant 0 : index
    %8 = vector.load %arg4[%c0_6, %c0_7] : memref<32x32xbf16, #tpu.memory_space<vmem>>, vector<32x32xbf16>
    %c0_8 = arith.constant 0 : index
    %c0_9 = arith.constant 0 : index
    %9 = vector.load %arg5[%c0_8, %c0_9] : memref<32x1xf32, #tpu.memory_space<vmem>>, vector<32x1xf32>
    %10 = arith.truncf %7 : vector<32x256xf32> to vector<32x256xbf16>
    %cst_10 = arith.constant dense<0.000000e+00> : vector<32x256xf32>
    %11 = tpu.matmul %8, %10, %cst_10 {dimension_numbers = #tpu.dot_dimension_numbers<[1], [0], [0], [1], [0, 0, 1, 1], [], []>} : vector<32x32xbf16>, vector<32x256xbf16>, vector<32x256xf32> -> vector<32x256xf32>
    %12 = vector.broadcast %9 : vector<32x1xf32> to vector<32x256xf32>
    %13 = arith.addf %11, %12 : vector<32x256xf32>
    %cst_11 = arith.constant 0.000000e+00 : f32
    %14 = vector.broadcast %cst_11 : f32 to vector<32x256xf32>
    %15 = arith.maximumf %13, %14 : vector<32x256xf32>
    %c0_12 = arith.constant 0 : index
    %c0_13 = arith.constant 0 : index
    %16 = vector.load %arg6[%c0_12, %c0_13] : memref<1x32xbf16, #tpu.memory_space<vmem>>, vector<1x32xbf16>
    %c0_14 = arith.constant 0 : index
    %c0_15 = arith.constant 0 : index
    %17 = vector.load %arg7[%c0_14, %c0_15] : memref<1x1xf32, #tpu.memory_space<vmem>>, vector<1x1xf32>
    %18 = arith.truncf %15 : vector<32x256xf32> to vector<32x256xbf16>
    %cst_16 = arith.constant dense<0.000000e+00> : vector<1x256xf32>
    %19 = tpu.matmul %16, %18, %cst_16 {dimension_numbers = #tpu.dot_dimension_numbers<[1], [0], [0], [1], [0, 0, 1, 1], [], []>} : vector<1x32xbf16>, vector<32x256xbf16>, vector<1x256xf32> -> vector<1x256xf32>
    %20 = vector.broadcast %17 : vector<1x1xf32> to vector<1x256xf32>
    %21 = arith.addf %19, %20 : vector<1x256xf32>
    %cst_17 = arith.constant 0.000000e+00 : f32
    %22 = vector.broadcast %cst_17 : f32 to vector<1x256xf32>
    %23 = arith.subf %22, %21 : vector<1x256xf32>
    %24 = math.exp %23 : vector<1x256xf32>
    %cst_18 = arith.constant 1.000000e+00 : f32
    %25 = vector.broadcast %cst_18 : f32 to vector<1x256xf32>
    %26 = arith.addf %25, %24 : vector<1x256xf32>
    %cst_19 = arith.constant 1.000000e+00 : f32
    %27 = vector.broadcast %cst_19 : f32 to vector<1x256xf32>
    %28 = arith.divf %27, %26 : vector<1x256xf32>
    %c0_20 = arith.constant 0 : index
    %c0_21 = arith.constant 0 : index
    %29 = vector.load %arg8[%c0_20, %c0_21] : memref<1x256xf32, #tpu.memory_space<vmem>>, vector<1x256xf32>
    tpu.vector_store %arg8[%c0_20, %c0_21], %28 {strides = array<i32>} : memref<1x256xf32, #tpu.memory_space<vmem>>, vector<1x256xf32>,
    return
  }
  func.func @transform_0(%arg0: i32) -> (i32, i32) {
    %c0_i32 = arith.constant 0 : i32
    %c0_i32_0 = arith.constant 0 : i32
    return %arg0, %c0_i32 : i32, i32
  }
  func.func @transform_1(%arg0: i32) -> (i32, i32) {
    %c0_i32 = arith.constant 0 : i32
    %c0_i32_0 = arith.constant 0 : i32
    %c0_i32_1 = arith.constant 0 : i32
    return %c0_i32, %c0_i32_0 : i32, i32
  }
  func.func @transform_2(%arg0: i32) -> (i32, i32) {
    %c0_i32 = arith.constant 0 : i32
    %c0_i32_0 = arith.constant 0 : i32
    %c0_i32_1 = arith.constant 0 : i32
    return %c0_i32, %c0_i32_0 : i32, i32
  }
  func.func @transform_3(%arg0: i32) -> (i32, i32) {
    %c0_i32 = arith.constant 0 : i32
    %c0_i32_0 = arith.constant 0 : i32
    %c0_i32_1 = arith.constant 0 : i32
    return %c0_i32, %c0_i32_0 : i32, i32
  }
  func.func @transform_4(%arg0: i32) -> (i32, i32) {
    %c0_i32 = arith.constant 0 : i32
    %c0_i32_0 = arith.constant 0 : i32
    %c0_i32_1 = arith.constant 0 : i32
    return %c0_i32, %c0_i32_0 : i32, i32
  }
  func.func @transform_5(%arg0: i32) -> (i32, i32) {
    %c0_i32 = arith.constant 0 : i32
    %c0_i32_0 = arith.constant 0 : i32
    %c0_i32_1 = arith.constant 0 : i32
    return %c0_i32, %c0_i32_0 : i32, i32
  }
  func.func @transform_6(%arg0: i32) -> (i32, i32) {
    %c0_i32 = arith.constant 0 : i32
    %c0_i32_0 = arith.constant 0 : i32
    %c0_i32_1 = arith.constant 0 : i32
    return %c0_i32, %c0_i32_0 : i32, i32
  }
  func.func @transform_7(%arg0: i32) -> (i32, i32) {
    %c0_i32 = arith.constant 0 : i32
    %c0_i32_0 = arith.constant 0 : i32
    return %c0_i32, %arg0 : i32, i32
  }
}

</mosaic_0001>

<llo_original>
// kernel: tpu_custom_call.1
$region0: #{tpu_custom_call.1}
  #allocation0 [shape = 'u32[]', space=smem, size = 0x4, offset = 0x4, fixed_abs, tag = 'smem constant byte address 0x4 - core index']
  #allocation1 [shape = 'u32[144,128]{1,0:T(1,128)}', space=vmem, size = 0x12000, scoped, tag = 'internal scratch']
  #allocation2 [shape = 'f32[1,1]{1,0:T(1,128)S(1)}', space=vmem, size = 0x200, scoped, tag = 'scoped memory for tpu_custom_call.1']
  %s0 = inlined_call_operand.vmem [shape: bf16[256,16], index: 0, kind: input, shape index: {}]
  %s1 = inlined_call_operand.vmem [shape: bf16[32,16], index: 1, kind: input, shape index: {}]
  %s2 = inlined_call_operand.vmem [shape: f32[32,1], index: 2, kind: input, shape index: {}]
  %s3 = inlined_call_operand.vmem [shape: bf16[32,32], index: 3, kind: input, shape index: {}]
  %s4 = inlined_call_operand.vmem [shape: f32[32,1], index: 4, kind: input, shape index: {}]
  %s5 = inlined_call_operand.vmem [shape: bf16[1,32], index: 5, kind: input, shape index: {}]
  %s6 = inlined_call_operand.<no memory space> [shape: f32[1,1], index: 6, kind: input, shape index: {}]
  %s7 = inlined_call_operand.hbm [shape: f32[1,256], index: 7, kind: output, shape index: {}]
  %s8 = sld [smem:[#allocation0]]
  $region38: #{tpu_custom_call.1} parent=0
    _
  %s10 = ssub.s32 1, %s8
  %s11 = scalar_select 0, %s10, %s8
  %v12 = vstv %s6
  %13 = vst [vmem:[#allocation2] sm:$0x1] %v12
  $region1: #{tpu_custom_call.1} parent=0
    #allocation3 [shape = 'u8[1024]{0}', space=vmem, size = 0x400, scoped, tag = 'output window, operand 0, single buffered']
    #allocation4 [shape = 's32[1]{0}', space=sflag, size = 0x4, scoped, tag = 'scoped memory for tpu_custom_call.1']
    %14 = vsyncpa [#allocation4], 0
    // Predicated region
    $region2: #{tpu_custom_call.1} parent=1 // pred_check
      _
    $region3: #{tpu_custom_call.1} parent=1 // pred_check_branch
      %16 = sbr.rel (0) target = $region5
    $region4: #{tpu_custom_call.1} parent=1 // pred_region
      _
    $region5: #{tpu_custom_call.1} parent=1 // pred_fallthru
      _
    // Predicated region
    $region6: #{tpu_custom_call.1} parent=1 // pred_check
      _
    $region7: #{tpu_custom_call.1} parent=1 // pred_check_branch
      %18 = sbr.rel (0) target = $region9
    $region8: #{tpu_custom_call.1} parent=1 // pred_region
      _
    $region9: #{tpu_custom_call.1} parent=1 // pred_fallthru
      _
    // Predicated region
    $region10: #{tpu_custom_call.1} parent=1 // pred_check
      _
    $region11: #{tpu_custom_call.1} parent=1 // pred_check_branch
      %20 = sbr.rel (0) target = $region13
    $region12: #{tpu_custom_call.1} parent=1 // pred_region
      _
    $region13: #{tpu_custom_call.1} parent=1 // pred_fallthru
      _
    // Predicated region
    $region14: #{tpu_custom_call.1} parent=1 // pred_check
      _
    $region15: #{tpu_custom_call.1} parent=1 // pred_check_branch
      %22 = sbr.rel (0) target = $region17
    $region16: #{tpu_custom_call.1} parent=1 // pred_region
      _
    $region17: #{tpu_custom_call.1} parent=1 // pred_fallthru
      _
    // Predicated region
    $region18: #{tpu_custom_call.1} parent=1 // pred_check
      _
    $region19: #{tpu_custom_call.1} parent=1 // pred_check_branch
      %24 = sbr.rel (0) target = $region21
    $region20: #{tpu_custom_call.1} parent=1 // pred_region
      _
    $region21: #{tpu_custom_call.1} parent=1 // pred_fallthru
      _
    // Predicated region
    $region22: #{tpu_custom_call.1} parent=1 // pred_check
      _
    $region23: #{tpu_custom_call.1} parent=1 // pred_check_branch
      %26 = sbr.rel (0) target = $region25
    $region24: #{tpu_custom_call.1} parent=1 // pred_region
      _
    $region25: #{tpu_custom_call.1} parent=1 // pred_fallthru
      _
    // Predicated region
    $region26: #{tpu_custom_call.1} parent=1 // pred_check
      _
    $region27: #{tpu_custom_call.1} parent=1 // pred_check_branch
      %28 = sbr.rel (0) target = $region29
    $region28: #{tpu_custom_call.1} parent=1 // pred_region
      _
    $region29: #{tpu_custom_call.1} parent=1 // pred_fallthru
      _
    %v30 = vld [vmem:[%s0] sm:$0xf]
    %v31 = vld [vmem:[%s0 + $0x4] sm:$0xf]
    %v32 = vld [vmem:[%s0 + $0x8] sm:$0xf]
    %v33 = vld [vmem:[%s0 + $0xc] sm:$0xf]
    %v34 = vld [vmem:[%s0 + $0x10] sm:$0xf]
    %v35 = vld [vmem:[%s0 + $0x14] sm:$0xf]
    %v36 = vld [vmem:[%s0 + $0x18] sm:$0xf]
    %v37 = vld [vmem:[%s0 + $0x1c] sm:$0xf]
    %v38 = vld [vmem:[%s0 + $0x20] sm:$0xf]
    %v39 = vld [vmem:[%s0 + $0x24] sm:$0xf]
    %v40 = vld [vmem:[%s0 + $0x28] sm:$0xf]
    %v41 = vld [vmem:[%s0 + $0x2c] sm:$0xf]
    %v42 = vld [vmem:[%s0 + $0x30] sm:$0xf]
    %v43 = vld [vmem:[%s0 + $0x34] sm:$0xf]
    %v44 = vld [vmem:[%s0 + $0x38] sm:$0xf]
    %v45 = vld [vmem:[%s0 + $0x3c] sm:$0xf]
    %v46 = vld [vmem:[%s0 + $0x40] sm:$0xf]
    %v47 = vld [vmem:[%s0 + $0x44] sm:$0xf]
    %v48 = vld [vmem:[%s0 + $0x48] sm:$0xf]
    %v49 = vld [vmem:[%s0 + $0x4c] sm:$0xf]
    %v50 = vld [vmem:[%s0 + $0x50] sm:$0xf]
    %v51 = vld [vmem:[%s0 + $0x54] sm:$0xf]
    %v52 = vld [vmem:[%s0 + $0x58] sm:$0xf]
    %v53 = vld [vmem:[%s0 + $0x5c] sm:$0xf]
    %v54 = vld [vmem:[%s0 + $0x60] sm:$0xf]
    %v55 = vld [vmem:[%s0 + $0x64] sm:$0xf]
    %v56 = vld [vmem:[%s0 + $0x68] sm:$0xf]
    %v57 = vld [vmem:[%s0 + $0x6c] sm:$0xf]
    %v58 = vld [vmem:[%s0 + $0x70] sm:$0xf]
    %v59 = vld [vmem:[%s0 + $0x74] sm:$0xf]
    %v60 = vld [vmem:[%s0 + $0x78] sm:$0xf]
    %v61 = vld [vmem:[%s0 + $0x7c] sm:$0xf]
    %v62 = vld [vmem:[%s1] sm:$0xf]
    %v63 = vld [vmem:[%s1 + $0x4] sm:$0xf]
    %v64 = vld [vmem:[%s1 + $0x8] sm:$0xf]
    %v65 = vld [vmem:[%s1 + $0xc] sm:$0xf]
    %v66 = vld [vmem:[%s2] sm:$0xff]
    %v67 = vld [vmem:[%s2 + $0x8] sm:$0xff]
    %v68 = vld [vmem:[%s2 + $0x10] sm:$0xff]
    %v69 = vld [vmem:[%s2 + $0x18] sm:$0xff]
    %71 = vset.pattern.permute.xlu0 0
    %72 = vperm.xlu0 %71, %v66
    %v73 = vpop.permute.xlu0 %72
    %76 = vset.pattern.permute.xlu0 0
    %77 = vperm.xlu0 %76, %v67
    %v78 = vpop.permute.xlu0 %77
    %81 = vset.pattern.permute.xlu0 0
    %82 = vperm.xlu0 %81, %v68
    %v83 = vpop.permute.xlu0 %82
    %86 = vset.pattern.permute.xlu0 0
    %87 = vperm.xlu0 %86, %v69
    %v88 = vpop.permute.xlu0 %87
    %v94 = vunpack.c.l.b16 %v62
    %v95 = vunpack.c.l.b16 %v63
    %v96 = vunpack.c.l.b16 %v64
    %v97 = vunpack.c.l.b16 %v65
    %v98 = vpack.c.b16 %v95, %v94
    %v99 = vpack.c.b16 %v97, %v96
    %v132 = vunpack.c.l.b16 %v30
    %v133 = vunpack.c.l.b16 %v31
    %v134 = vunpack.c.l.b16 %v32
    %v135 = vunpack.c.l.b16 %v33
    %v136 = vunpack.c.l.b16 %v34
    %v137 = vunpack.c.l.b16 %v35
    %v138 = vunpack.c.l.b16 %v36
    %v139 = vunpack.c.l.b16 %v37
    %v140 = vunpack.c.l.b16 %v38
    %v141 = vunpack.c.l.b16 %v39
    %v142 = vunpack.c.l.b16 %v40
    %v143 = vunpack.c.l.b16 %v41
    %v144 = vunpack.c.l.b16 %v42
    %v145 = vunpack.c.l.b16 %v43
    %v146 = vunpack.c.l.b16 %v44
    %v147 = vunpack.c.l.b16 %v45
    %v148 = vunpack.c.l.b16 %v46
    %v149 = vunpack.c.l.b16 %v47
    %v150 = vunpack.c.l.b16 %v48
    %v151 = vunpack.c.l.b16 %v49
    %v152 = vunpack.c.l.b16 %v50
    %v153 = vunpack.c.l.b16 %v51
    %v154 = vunpack.c.l.b16 %v52
    %v155 = vunpack.c.l.b16 %v53
    %v156 = vunpack.c.l.b16 %v54
    %v157 = vunpack.c.l.b16 %v55
    %v158 = vunpack.c.l.b16 %v56
    %v159 = vunpack.c.l.b16 %v57
    %v160 = vunpack.c.l.b16 %v58
    %v161 = vunpack.c.l.b16 %v59
    %v162 = vunpack.c.l.b16 %v60
    %v163 = vunpack.c.l.b16 %v61
    %v164 = vpack.c.b16 %v133, %v132
    %v165 = vpack.c.b16 %v135, %v134
    %v166 = vpack.c.b16 %v137, %v136
    %v167 = vpack.c.b16 %v139, %v138
    %v168 = vpack.c.b16 %v141, %v140
    %v169 = vpack.c.b16 %v143, %v142
    %v170 = vpack.c.b16 %v145, %v144
    %v171 = vpack.c.b16 %v147, %v146
    %v172 = vpack.c.b16 %v149, %v148
    %v173 = vpack.c.b16 %v151, %v150
    %v174 = vpack.c.b16 %v153, %v152
    %v175 = vpack.c.b16 %v155, %v154
    %v176 = vpack.c.b16 %v157, %v156
    %v177 = vpack.c.b16 %v159, %v158
    %v178 = vpack.c.b16 %v161, %v160
    %v179 = vpack.c.b16 %v163, %v162
    %vm180 = vcmask 130048
    %v182 = vsel %vm180, %v98, 0
    %v185 = vsel %vm180, %v99, 0
    %v188 = vsel %vm180, %v164, 0
    %v191 = vsel %vm180, %v165, 0
    %v194 = vsel %vm180, %v166, 0
    %v197 = vsel %vm180, %v167, 0
    %v200 = vsel %vm180, %v168, 0
    %v203 = vsel %vm180, %v169, 0
    %v206 = vsel %vm180, %v170, 0
    %v209 = vsel %vm180, %v171, 0
    %v212 = vsel %vm180, %v172, 0
    %v215 = vsel %vm180, %v173, 0
    %v218 = vsel %vm180, %v174, 0
    %v221 = vsel %vm180, %v175, 0
    %v224 = vsel %vm180, %v176, 0
    %v227 = vsel %vm180, %v177, 0
    %v230 = vsel %vm180, %v178, 0
    %v233 = vsel %vm180, %v179, 0
    %235 = vmatprep.subr.bf16.mxu0 0
    %236 = vmatpush1.bf16.xpose.msra.mxu0 %v209
    %237 = vmatprep.subr.bf16.mxu0 0
    %238 = vmatpush1.bf16.xpose.msra.mxu0 %v206
    %239 = vmatprep.subr.bf16.mxu0 0
    %240 = vmatpush1.bf16.xpose.msra.mxu0 %v203
    %241 = vmatprep.subr.bf16.mxu0 0
    %242 = vmatpush1.bf16.xpose.msra.mxu0 %v200
    %243 = vmatprep.subr.bf16.mxu0 0
    %244 = vmatpush1.bf16.xpose.msra.mxu0 %v197
    %245 = vmatprep.subr.bf16.mxu0 0
    %246 = vmatpush1.bf16.xpose.msra.mxu0 %v194
    %247 = vmatprep.subr.bf16.mxu0 0
    %248 = vmatpush1.bf16.xpose.msra.mxu0 %v191
    %249 = vmatprep.subr.bf16.mxu0 0
    %250 = vmatpush1.bf16.xpose.msra.mxu0 %v188
    %251 = vmatprep.subr.bf16.mxu0 0
    %252 = vmatpush2.bf16.xpose.msra.mxu0 %v233
    %253 = vmatprep.subr.bf16.mxu0 0
    %254 = vmatpush2.bf16.xpose.msra.mxu0 %v230
    %255 = vmatprep.subr.bf16.mxu0 0
    %256 = vmatpush2.bf16.xpose.msra.mxu0 %v227
    %257 = vmatprep.subr.bf16.mxu0 0
    %258 = vmatpush2.bf16.xpose.msra.mxu0 %v224
    %259 = vmatprep.subr.bf16.mxu0 0
    %260 = vmatpush2.bf16.xpose.msra.mxu0 %v221
    %261 = vmatprep.subr.bf16.mxu0 0
    %262 = vmatpush2.bf16.xpose.msra.mxu0 %v218
    %263 = vmatprep.subr.bf16.mxu0 0
    %264 = vmatpush2.bf16.xpose.msra.mxu0 %v215
    %265 = vmatprep.subr.bf16.mxu0 0
    %266 = vmatpush2.bf16.xpose.msra.mxu0 %v212
    %267 = vmatprep.mubr.bf16.mxu0 0
    %268 = vmatmul.mubr.bf16.gmra.mxu0 %v182
    %v269 = vpop.f32.mrf.mxu0
    %v270 = vadd.f32 %v73, %v269
    %v271 = vpop.f32.mrf.mxu0
    %v272 = vadd.f32 %v73, %v271
    %v273 = vpop.f32.mrf.mxu0
    %v274 = vadd.f32 %v78, %v273
    %v275 = vpop.f32.mrf.mxu0
    %v276 = vadd.f32 %v78, %v275
    %277 = vmatprep.mubr.bf16.mxu0 0
    %278 = vmatmul.mubr.bf16.gmra.mxu0 %v185
    %v279 = vpop.f32.mrf.mxu0
    %v280 = vadd.f32 %v83, %v279
    %v281 = vpop.f32.mrf.mxu0
    %v282 = vadd.f32 %v83, %v281
    %v283 = vpop.f32.mrf.mxu0
    %v284 = vadd.f32 %v88, %v283
    %v285 = vpop.f32.mrf.mxu0
    %v286 = vadd.f32 %v88, %v285
    %287 = vdwg.mxu0
    %v288 = vmax.f32 %v270, 0.0
    %v289 = vmax.f32 %v272, 0.0
    %v290 = vmax.f32 %v274, 0.0
    %v291 = vmax.f32 %v276, 0.0
    %v292 = vmax.f32 %v280, 0.0
    %v293 = vmax.f32 %v282, 0.0
    %v294 = vmax.f32 %v284, 0.0
    %v295 = vmax.f32 %v286, 0.0
    %v296 = vld [vmem:[%s3] sm:$0xf]
    %v297 = vld [vmem:[%s3 + $0x4] sm:$0xf]
    %v298 = vld [vmem:[%s3 + $0x8] sm:$0xf]
    %v299 = vld [vmem:[%s3 + $0xc] sm:$0xf]
    %v300 = vld [vmem:[%s4] sm:$0xff]
    %v301 = vld [vmem:[%s4 + $0x8] sm:$0xff]
    %v302 = vld [vmem:[%s4 + $0x10] sm:$0xff]
    %v303 = vld [vmem:[%s4 + $0x18] sm:$0xff]
    %v304 = vpack.c.bf16 %v290, %v288
    %v305 = vpack.c.bf16 %v291, %v289
    %v306 = vpack.c.bf16 %v294, %v292
    %v307 = vpack.c.bf16 %v295, %v293
    %309 = vset.pattern.permute.xlu0 0
    %310 = vperm.xlu0 %309, %v300
    %v311 = vpop.permute.xlu0 %310
    %314 = vset.pattern.permute.xlu0 0
    %315 = vperm.xlu0 %314, %v301
    %v316 = vpop.permute.xlu0 %315
    %319 = vset.pattern.permute.xlu0 0
    %320 = vperm.xlu0 %319, %v302
    %v321 = vpop.permute.xlu0 %320
    %324 = vset.pattern.permute.xlu0 0
    %325 = vperm.xlu0 %324, %v303
    %v326 = vpop.permute.xlu0 %325
    %v332 = vunpack.c.l.b16 %v296
    %v333 = vunpack.c.l.b16 %v297
    %v334 = vunpack.c.l.b16 %v298
    %v335 = vunpack.c.l.b16 %v299
    %v336 = vpack.c.b16 %v333, %v332
    %v337 = vpack.c.b16 %v335, %v334
    %vm338 = vcmask 261120
    %v340 = vsel %vm338, %v336, 0
    %v343 = vsel %vm338, %v337, 0
    %345 = vmatprep.subr.bf16.mxu0 0
    %346 = vmatpush1.bf16.msra.mxu0 0
    %347 = vmatprep.subr.bf16.mxu0 0
    %348 = vmatpush1.bf16.msra.mxu0 0
    %349 = vmatprep.subr.bf16.mxu0 0
    %350 = vmatpush1.bf16.msra.mxu0 0
    %351 = vmatprep.subr.bf16.mxu0 0
    %352 = vmatpush1.bf16.msra.mxu0 0
    %353 = vmatprep.subr.bf16.mxu0 0
    %354 = vmatpush1.bf16.msra.mxu0 0
    %355 = vmatprep.subr.bf16.mxu0 0
    %356 = vmatpush1.bf16.msra.mxu0 0
    %357 = vmatprep.subr.bf16.mxu0 %v307
    %358 = vmatpush1.bf16.msra.mxu0 %v306
    %359 = vmatprep.subr.bf16.mxu0 %v305
    %360 = vmatpush1.bf16.msra.mxu0 %v304
    %361 = vmatprep.subr.bf16.mxu0 0
    %362 = vmatpush2.bf16.msra.mxu0 0
    %363 = vmatprep.subr.bf16.mxu0 0
    %364 = vmatpush2.bf16.msra.mxu0 0
    %365 = vmatprep.subr.bf16.mxu0 0
    %366 = vmatpush2.bf16.msra.mxu0 0
    %367 = vmatprep.subr.bf16.mxu0 0
    %368 = vmatpush2.bf16.msra.mxu0 0
    %369 = vmatprep.subr.bf16.mxu0 0
    %370 = vmatpush2.bf16.msra.mxu0 0
    %371 = vmatprep.subr.bf16.mxu0 0
    %372 = vmatpush2.bf16.msra.mxu0 0
    %373 = vmatprep.subr.bf16.mxu0 0
    %374 = vmatpush2.bf16.msra.mxu0 0
    %375 = vmatprep.subr.bf16.mxu0 0
    %376 = vmatpush2.bf16.msra.mxu0 0
    %377 = vmatprep.mubr.bf16.mxu0 0
    %378 = vmatmul.mubr.bf16.gmra.mxu0 %v340
    %v379 = vpop.f32.mrf.mxu0
    %v380 = vadd.f32 %v311, %v379
    %v381 = vpop.f32.mrf.mxu0
    %v382 = vadd.f32 %v311, %v381
    %v383 = vpop.f32.mrf.mxu0
    %v384 = vadd.f32 %v316, %v383
    %v385 = vpop.f32.mrf.mxu0
    %v386 = vadd.f32 %v316, %v385
    %387 = vmatprep.mubr.bf16.mxu0 0
    %388 = vmatmul.mubr.bf16.gmra.mxu0 %v343
    %v389 = vpop.f32.mrf.mxu0
    %v390 = vadd.f32 %v321, %v389
    %v391 = vpop.f32.mrf.mxu0
    %v392 = vadd.f32 %v321, %v391
    %v393 = vpop.f32.mrf.mxu0
    %v394 = vadd.f32 %v326, %v393
    %v395 = vpop.f32.mrf.mxu0
    %v396 = vadd.f32 %v326, %v395
    %397 = vdwg.mxu0
    %v398 = vmax.f32 %v380, 0.0
    %v399 = vmax.f32 %v382, 0.0
    %v400 = vmax.f32 %v384, 0.0
    %v401 = vmax.f32 %v386, 0.0
    %v402 = vmax.f32 %v390, 0.0
    %v403 = vmax.f32 %v392, 0.0
    %v404 = vmax.f32 %v394, 0.0
    %v405 = vmax.f32 %v396, 0.0
    %v406 = vld [vmem:[%s5] sm:$0x1]
    %v407 = vld [vmem:[#allocation2] sm:$0x1]
    %v408 = vpack.c.bf16 %v400, %v398
    %v409 = vpack.c.bf16 %v401, %v399
    %v410 = vpack.c.bf16 %v404, %v402
    %v411 = vpack.c.bf16 %v405, %v403
    %413 = vset.pattern.permute.xlu0 0
    %414 = vperm.xlu0 %413, %v407
    %v415 = vpop.permute.xlu0 %414
    %v417 = vlaneseq
    %v418 = vshrl.u32 %v417, 7
    %v419 = vsub.s32 0, %v418
    %v420 = vrot.slane %v415, %v419
    %v422 = vsel %vm338, %v406, 0
    %424 = vmatprep.subr.bf16.mxu0 0
    %425 = vmatpush1.bf16.msra.mxu0 0
    %426 = vmatprep.subr.bf16.mxu0 0
    %427 = vmatpush1.bf16.msra.mxu0 0
    %428 = vmatprep.subr.bf16.mxu0 0
    %429 = vmatpush1.bf16.msra.mxu0 0
    %430 = vmatprep.subr.bf16.mxu0 0
    %431 = vmatpush1.bf16.msra.mxu0 0
    %432 = vmatprep.subr.bf16.mxu0 0
    %433 = vmatpush1.bf16.msra.mxu0 0
    %434 = vmatprep.subr.bf16.mxu0 0
    %435 = vmatpush1.bf16.msra.mxu0 0
    %436 = vmatprep.subr.bf16.mxu0 %v411
    %437 = vmatpush1.bf16.msra.mxu0 %v410
    %438 = vmatprep.subr.bf16.mxu0 %v409
    %439 = vmatpush1.bf16.msra.mxu0 %v408
    %440 = vmatprep.subr.bf16.mxu0 0
    %441 = vmatpush2.bf16.msra.mxu0 0
    %442 = vmatprep.subr.bf16.mxu0 0
    %443 = vmatpush2.bf16.msra.mxu0 0
    %444 = vmatprep.subr.bf16.mxu0 0
    %445 = vmatpush2.bf16.msra.mxu0 0
    %446 = vmatprep.subr.bf16.mxu0 0
    %447 = vmatpush2.bf16.msra.mxu0 0
    %448 = vmatprep.subr.bf16.mxu0 0
    %449 = vmatpush2.bf16.msra.mxu0 0
    %450 = vmatprep.subr.bf16.mxu0 0
    %451 = vmatpush2.bf16.msra.mxu0 0
    %452 = vmatprep.subr.bf16.mxu0 0
    %453 = vmatpush2.bf16.msra.mxu0 0
    %454 = vmatprep.subr.bf16.mxu0 0
    %455 = vmatpush2.bf16.msra.mxu0 0
    %456 = vmatprep.mubr.bf16.mxu0 0
    %457 = vmatmul.mubr.bf16.gmra.mxu0 %v422
    %v458 = vpop.f32.mrf.mxu0
    %v459 = vadd.f32 %v420, %v458
    %v460 = vpop.f32.mrf.mxu0
    %v461 = vadd.f32 %v420, %v460
    %v462 = vpop.f32.mrf.mxu0
    %v463 = vpop.f32.mrf.mxu0
    %464 = vdwg.mxu0
    %v465 = vsub.f32 0.0, %v459
    %v466 = vsub.f32 0.0, %v461
    %v467 = vmul.f32 %v465, 1.442695
    %v468 = vpow.pop %v467
    %v469 = vmul.f32 %v466, 1.442695
    %v470 = vpow.pop %v469
    %v471 = vadd.f32 %v468, 1.0
    %v472 = vadd.f32 %v470, 1.0
    %v473 = vrcp.pop %v471
    %v474 = vmul.f32 1.0, %v473
    %v475 = vrcp.pop %v472
    %v476 = vmul.f32 1.0, %v475
    %v479 = vcombine.low %v474, %v476
    %v481 = vunpack.c.l.s4 1966171168
    %v482 = vunpack.c.0.s8 %v481
    %v483 = vlaneseq
    %v484 = vshrl.u32 %v483, 7
    %v485 = vsub.s32 %v482, %v484
    %v486 = vrot.slane %v479, %v485
    %v488 = vunpack.c.l.s4 1966171168
    %v489 = vunpack.c.0.s8 %v488
    %v490 = vlaneseq
    %v491 = vshrl.u32 %v490, 7
    %v492 = vsub.s32 %v489, %v491
    %v493 = vrot.slane %v486, %v492
    %v495 = vlaneseq
    %vm496 = vcmp.ge.s32.totalorder %v495, 0
    %vm497 = vcmp.lt.s32.totalorder %v495, 256
    %vm498 = vmand %vm496, %vm497
    %499 = vst.msk [vmem:[#allocation3] sm:$0x3] %vm498, %v493
    // Predicated region
    $region30: #{tpu_custom_call.1} parent=1 // pred_check
      _
    $region31: #{tpu_custom_call.1} parent=1 // pred_check_branch
      %501 = sbr.rel (0) target = $region33
    $region32: #{tpu_custom_call.1} parent=1 // pred_region
      %s503 = ssub.s32 32, 32
      %504 = vsyncadd [#allocation4], %s503
      %s506 = sshll.u32 [#allocation3], 4
      %s507 = int_to_ptr.vmem [resolvable:$true] %s506
      %509 = dma.vmem_to_hbm [thread:$0]  %s507, 32, %s7, [#allocation4]
    $region33: #{tpu_custom_call.1} parent=1 // pred_fallthru
      _
    // Predicated region
    $region34: #{tpu_custom_call.1} parent=1 // pred_check
      _
    $region35: #{tpu_custom_call.1} parent=1 // pred_check_branch
      %511 = sbr.rel (0) target = $region37
    $region36: #{tpu_custom_call.1} parent=1 // pred_region
      %512 = dma.done [#allocation4], 32
    $region37: #{tpu_custom_call.1} parent=1 // pred_fallthru
      _
    %513 = vsyncpa [#allocation4], 1

</llo_original>
